<compile_context>
chip_gen: v7x
topology: tpu7x:2x2x1
jax: 0.10.0
libtpu: 0.0.40
codegen_flags: <defaults>
</compile_context>

<pallas_src>
import functools
import math

import jax
import jax.numpy as jnp
from jax import lax
from jax.experimental import pallas as pl
from jax.experimental.pallas import tpu as pltpu

EPS = 1e-07
ONE_HOT_MIN = 1e-04
NEG_LOG_ONE_HOT_MIN = -math.log(ONE_HOT_MIN)   # == -log(clamp-min of the one-hot)

MAX_TILE_N = 16384                             # lanes per grid step (per-buffer ~1 MiB f32)


def _round_up(x, m):
    return ((x + m - 1) // m) * m


def _sce_kernel(pred_ref, labels_ref, out_ref, acc_ref, *,
                a, b, n_total, tile_n, tiles_per_core):
    h = pl.program_id(0)          # core split (size 1 by default; CORE_PARALLEL on v7x)
    t = pl.program_id(1)          # batch tile within the split (reduction axis, trailing)

    @pl.when(t == 0)
    def _init():
        acc_ref[...] = jnp.zeros_like(acc_ref)

    x = pred_ref[...].astype(jnp.float32)            # (K, T): classes on sublanes, samples on lanes
    labels = labels_ref[...]                         # (1, T) int32
    k, tt = x.shape

    # Per-sample softmax statistics; reductions run over the tiny K sublane axis,
    # all 128 lanes (samples) stay busy.
    col_max = jnp.max(x, axis=0, keepdims=True)      # (1, T)
    ex = jnp.exp(x - col_max)                        # (K, T) -- the only per-element transcendental
    sum_ex = jnp.sum(ex, axis=0, keepdims=True)      # (1, T)
    lse = col_max + jnp.log(sum_ex)                  # (1, T)

    # Row-wise exact reciprocal (hoisted out of the (K, T) elementwise divide).
    inv = 1.0 / sum_ex                               # (1, T)
    p = jnp.maximum(ex * inv, EPS)                   # clamp(softmax, eps, .); upper clamp is a
    if k < 2:                                        # 1-ulp no-op for K >= 2, so only applied
        p = jnp.minimum(p, 1.0)                      # in the degenerate K == 1 case.
    sum_p = jnp.sum(p, axis=0, keepdims=True)        # (1, T)

    class_ids = lax.broadcasted_iota(jnp.int32, (k, tt), 0)
    # CE gathers logit column `labels`; the RCE one-hot was sliced [:, 1:], so its
    # "hit" column is labels - 1 (labels == 0 hits nothing -> p_label = 0).
    ce_hit = class_ids == labels
    rce_hit = class_ids == (labels - 1)
    x_label = jnp.sum(jnp.where(ce_hit, x, 0.0), axis=0, keepdims=True)    # (1, T)
    p_label = jnp.sum(jnp.where(rce_hit, p, 0.0), axis=0, keepdims=True)   # (1, T)

    ce = lse - x_label                                                     # (1, T)
    # -sum_j p_j * log(clamp(one_hot_j, 1e-4, 1)) == -log(1e-4) * (sum_p - p_label)
    rce = jnp.float32(NEG_LOG_ONE_HOT_MIN) * (sum_p - p_label)             # (1, T)
    contrib = jnp.float32(a) * ce + jnp.float32(b) * rce                   # (1, T)

    # Mask out padded samples (global sample index >= n_total).
    col0 = (h * tiles_per_core + t) * tile_n
    col = col0 + lax.broadcasted_iota(jnp.int32, (1, tt), 1)
    acc_ref[...] += jnp.where(col < n_total, contrib, 0.0)

    @pl.when(t == pl.num_programs(1) - 1)
    def _finalize():
        total = jnp.sum(acc_ref[...])
        out_ref[...] = jnp.broadcast_to(total, out_ref.shape).astype(jnp.float32)


def sce_loss(pred, labels, *, num_classes=10, a=1.0, b=1.0, tile_n=None, num_cores=1):
    """pred: (N, num_classes - 1) float, labels: (N,) int in [0, num_classes - 1).

    Returns the scalar f32 SCE loss (a * CE + b * mean(RCE)).
    num_cores=2 shards the batch across TensorCores via CORE_PARALLEL (v7x); default 1."""
    n, k = pred.shape
    if k != num_classes - 1:
        # The module's one_hot(labels, num_classes)[:, 1:] only broadcasts against
        # pred when pred has num_classes - 1 columns.
        raise ValueError(f"pred must have num_classes - 1 = {num_classes - 1} columns, got {k}")
    labels = labels.astype(jnp.int32)

    # Tile sizing: as large as possible (amortizes per-step pipeline overhead) while
    # keeping the padded tail under ~128 lanes per tile.
    per_core = pl.cdiv(n, num_cores)
    if tile_n is None:
        tiles_per_core = max(1, pl.cdiv(per_core, MAX_TILE_N))
        tile_n = _round_up(pl.cdiv(per_core, tiles_per_core), 128)
    else:
        tile_n = _round_up(tile_n, 128)
        tiles_per_core = max(1, pl.cdiv(per_core, tile_n))
    n_pad = num_cores * tiles_per_core * tile_n

    # Lane-dense layout: classes on sublanes, samples on lanes.  Transpose + (small)
    # pad in one expression so XLA fuses them into a single copy of pred.
    pred_t = jnp.pad(jnp.transpose(pred), ((0, 0), (0, n_pad - n)))        # (K, n_pad), keeps dtype
    labels_row = jnp.pad(labels, (0, n_pad - n)).reshape(1, n_pad)

    kernel = functools.partial(
        _sce_kernel, a=float(a), b=float(b), n_total=n,
        tile_n=tile_n, tiles_per_core=tiles_per_core)

    bytes_in = int(pred.size) * pred.dtype.itemsize + n_pad * 4
    cost = pl.CostEstimate(
        flops=12 * n_pad * k,
        transcendentals=n_pad * (k + 2),
        bytes_accessed=bytes_in + num_cores * 128 * 4)

    if num_cores > 1:
        dim_sems = (pltpu.CORE_PARALLEL, pltpu.ARBITRARY)
    else:
        dim_sems = ("arbitrary", "arbitrary")

    partials = pl.pallas_call(
        kernel,
        out_shape=jax.ShapeDtypeStruct((num_cores, 128), jnp.float32),
        grid_spec=pltpu.PrefetchScalarGridSpec(
            num_scalar_prefetch=0,
            grid=(num_cores, tiles_per_core),
            in_specs=[
                pl.BlockSpec((k, tile_n), lambda h, t: (0, h * tiles_per_core + t)),
                pl.BlockSpec((1, tile_n), lambda h, t: (0, h * tiles_per_core + t)),
            ],
            out_specs=pl.BlockSpec((1, 128), lambda h, t: (h, 0)),
            scratch_shapes=[pltpu.VMEM((1, tile_n), jnp.float32)],
        ),
        compiler_params=pltpu.CompilerParams(
            dimension_semantics=dim_sems,
            vmem_limit_bytes=32 * 1024 * 1024,   # tiles + temps stay well below this
        ),
        cost_estimate=cost,
    )(pred_t, labels_row)

    return jnp.sum(partials[:, 0]) / jnp.float32(n)


def _sce_reference(pred, labels, *, num_classes=10, a=1.0, b=1.0):
    """Line-by-line JAX mirror of the PyTorch forward."""
    pred = pred.astype(jnp.float32)
    logp = jax.nn.log_softmax(pred, axis=1)
    ce = -jnp.mean(jnp.take_along_axis(logp, labels[:, None], axis=1)[:, 0])
    p = jax.nn.softmax(pred, axis=1)
    p = jnp.clip(p, EPS, 1.0)
    oh = jax.nn.one_hot(labels, num_classes, dtype=jnp.float32)[:, 1:]
    oh = jnp.clip(oh, ONE_HOT_MIN, 1.0)
    rce = -jnp.sum(p * jnp.log(oh), axis=1)
    return a * ce + b * jnp.mean(rce)


if __name__ == "__main__":
    key = jax.random.PRNGKey(0)

    configs = [
        # (n, num_classes, a, b, dtype, tile_n)
        dict(n=8,   num_classes=10, a=1.0, b=1.0, dtype=jnp.float32,  tile_n=None),  # single tile
        dict(n=300, num_classes=10, a=0.5, b=2.0, dtype=jnp.float32,  tile_n=128),   # 3 tiles + ragged-tail masking
        dict(n=64,  num_classes=10, a=1.0, b=1.0, dtype=jnp.bfloat16, tile_n=None),  # narrow-DMA path
    ]

    for i, cfg in enumerate(configs):
        k1, k2, key = jax.random.split(key, 3)
        n, c = cfg["n"], cfg["num_classes"]
        pred = (jax.random.normal(k1, (n, c - 1), dtype=jnp.float32) * 3.0).astype(cfg["dtype"])
        labels = jax.random.randint(k2, (n,), 0, c - 1, dtype=jnp.int32)

        loss = sce_loss(pred, labels, num_classes=c, a=cfg["a"], b=cfg["b"], tile_n=cfg["tile_n"])
        loss = jax.block_until_ready(loss)

        ref = _sce_reference(pred, labels, num_classes=c, a=cfg["a"], b=cfg["b"])
        assert jnp.isfinite(loss), (i, float(loss))
        assert jnp.allclose(loss, ref, rtol=1e-5, atol=1e-5), (i, float(loss), float(ref))

    print("KERNEL_OK")
</pallas_src>

<mosaic_0001>
module attributes {stable_mosaic.version = 11 : i64} {
  func.func @_sce_kernel(%arg0: i32, %arg1: i32, %arg2: memref<9x128xf32, #tpu.memory_space<vmem>>, %arg3: memref<1x128xi32, #tpu.memory_space<vmem>>, %arg4: memref<1x128xf32, #tpu.memory_space<vmem>>, %arg5: memref<1x128xf32, #tpu.memory_space<vmem>>) attributes {dimension_semantics = [#tpu.dimension_semantics<arbitrary>, #tpu.dimension_semantics<arbitrary>], iteration_bounds = array<i64: 1, 1>, scalar_prefetch = 0 : i64, scratch_operands = 1 : i64, tpu.core_type = #tpu.core_type<tc>, window_params = [{transform_indices = @transform_0, window_bounds = array<i64: 9, 128>}, {transform_indices = @transform_1, window_bounds = array<i64: 1, 128>}, {transform_indices = @transform_2, window_bounds = array<i64: 1, 128>}]} {
    %c0_i32 = arith.constant 0 : i32
    %0 = arith.cmpi eq, %arg1, %c0_i32 : i32
    %1 = arith.extui %0 : i1 to i32
    %c0_i32_0 = arith.constant 0 : i32
    %2 = arith.cmpi ne, %1, %c0_i32_0 : i32
    scf.if %2 {
      %cst_23 = arith.constant 0.000000e+00 : f32
      %62 = vector.broadcast %cst_23 : f32 to vector<1x128xf32>
      %c0_24 = arith.constant 0 : index
      %c0_25 = arith.constant 0 : index
      %63 = vector.load %arg5[%c0_24, %c0_25] : memref<1x128xf32, #tpu.memory_space<vmem>>, vector<1x128xf32>
      tpu.vector_store %arg5[%c0_24, %c0_25], %62 {strides = array<i32>} : memref<1x128xf32, #tpu.memory_space<vmem>>, vector<1x128xf32>,
    } else {
    }
    %c0 = arith.constant 0 : index
    %c0_1 = arith.constant 0 : index
    %3 = vector.load %arg2[%c0, %c0_1] : memref<9x128xf32, #tpu.memory_space<vmem>>, vector<9x128xf32>
    %c0_2 = arith.constant 0 : index
    %c0_3 = arith.constant 0 : index
    %4 = vector.load %arg3[%c0_2, %c0_3] : memref<1x128xi32, #tpu.memory_space<vmem>>, vector<1x128xi32>
    %cst = arith.constant dense<0xFF800000> : vector<128xf32>
    %5 = vector.multi_reduction <maximumf>, %3, %cst [0] : vector<9x128xf32> to vector<128xf32>
    %6 = vector.shape_cast %5 : vector<128xf32> to vector<1x128xf32>
    %7 = vector.broadcast %6 : vector<1x128xf32> to vector<9x128xf32>
    %8 = arith.subf %3, %7 : vector<9x128xf32>
    %9 = math.exp %8 : vector<9x128xf32>
    %cst_4 = arith.constant dense<0.000000e+00> : vector<128xf32>
    %10 = vector.multi_reduction <add>, %9, %cst_4 [0] : vector<9x128xf32> to vector<128xf32>
    %11 = vector.shape_cast %10 : vector<128xf32> to vector<1x128xf32>
    %12 = math.log %11 : vector<1x128xf32>
    %13 = arith.addf %6, %12 : vector<1x128xf32>
    %cst_5 = arith.constant 1.000000e+00 : f32
    %14 = vector.broadcast %cst_5 : f32 to vector<1x128xf32>
    %15 = arith.divf %14, %11 : vector<1x128xf32>
    %16 = vector.broadcast %15 : vector<1x128xf32> to vector<9x128xf32>
    %17 = arith.mulf %9, %16 : vector<9x128xf32>
    %cst_6 = arith.constant 1.000000e-07 : f32
    %18 = vector.broadcast %cst_6 : f32 to vector<9x128xf32>
    %19 = arith.maximumf %17, %18 : vector<9x128xf32>
    %cst_7 = arith.constant dense<0.000000e+00> : vector<128xf32>
    %20 = vector.multi_reduction <add>, %19, %cst_7 [0] : vector<9x128xf32> to vector<128xf32>
    %21 = vector.shape_cast %20 : vector<128xf32> to vector<1x128xf32>
    %22 = tpu.iota {dimensions = array<i32: 0>} : vector<9x128xi32>
    %23 = vector.broadcast %4 : vector<1x128xi32> to vector<9x128xi32>
    %24 = arith.cmpi eq, %22, %23 : vector<9x128xi32>
    %c1_i32 = arith.constant 1 : i32
    %25 = vector.broadcast %c1_i32 : i32 to vector<1x128xi32>
    %26 = arith.subi %4, %25 : vector<1x128xi32>
    %27 = vector.broadcast %26 : vector<1x128xi32> to vector<9x128xi32>
    %28 = arith.cmpi eq, %22, %27 : vector<9x128xi32>
    %cst_8 = arith.constant 0.000000e+00 : f32
    %29 = vector.broadcast %cst_8 : f32 to vector<9x128xf32>
    %30 = arith.select %24, %3, %29 : vector<9x128xi1>, vector<9x128xf32>
    %cst_9 = arith.constant dense<0.000000e+00> : vector<128xf32>
    %31 = vector.multi_reduction <add>, %30, %cst_9 [0] : vector<9x128xf32> to vector<128xf32>
    %32 = vector.shape_cast %31 : vector<128xf32> to vector<1x128xf32>
    %cst_10 = arith.constant 0.000000e+00 : f32
    %33 = vector.broadcast %cst_10 : f32 to vector<9x128xf32>
    %34 = arith.select %28, %19, %33 : vector<9x128xi1>, vector<9x128xf32>
    %cst_11 = arith.constant dense<0.000000e+00> : vector<128xf32>
    %35 = vector.multi_reduction <add>, %34, %cst_11 [0] : vector<9x128xf32> to vector<128xf32>
    %36 = vector.shape_cast %35 : vector<128xf32> to vector<1x128xf32>
    %37 = arith.subf %13, %32 : vector<1x128xf32>
    %38 = arith.subf %21, %36 : vector<1x128xf32>
    %cst_12 = arith.constant 9.21034049 : f32
    %39 = vector.broadcast %cst_12 : f32 to vector<1x128xf32>
    %40 = arith.mulf %39, %38 : vector<1x128xf32>
    %cst_13 = arith.constant 1.000000e+00 : f32
    %41 = vector.broadcast %cst_13 : f32 to vector<1x128xf32>
    %42 = arith.mulf %41, %37 : vector<1x128xf32>
    %cst_14 = arith.constant 1.000000e+00 : f32
    %43 = vector.broadcast %cst_14 : f32 to vector<1x128xf32>
    %44 = arith.mulf %43, %40 : vector<1x128xf32>
    %45 = arith.addf %42, %44 : vector<1x128xf32>
    %c1_i32_15 = arith.constant 1 : i32
    %46 = arith.muli %arg0, %c1_i32_15 : i32
    %47 = arith.addi %46, %arg1 : i32
    %c128_i32 = arith.constant 128 : i32
    %48 = arith.muli %47, %c128_i32 : i32
    %49 = tpu.iota {dimensions = array<i32: 1>} : vector<1x128xi32>
    %50 = vector.broadcast %48 : i32 to vector<1x128xi32>
    %51 = arith.addi %50, %49 : vector<1x128xi32>
    %c0_16 = arith.constant 0 : index
    %c0_17 = arith.constant 0 : index
    %52 = vector.load %arg5[%c0_16, %c0_17] : memref<1x128xf32, #tpu.memory_space<vmem>>, vector<1x128xf32>
    %c8_i32 = arith.constant 8 : i32
    %53 = vector.broadcast %c8_i32 : i32 to vector<1x128xi32>
    %54 = arith.cmpi slt, %51, %53 : vector<1x128xi32>
    %cst_18 = arith.constant 0.000000e+00 : f32
    %55 = vector.broadcast %cst_18 : f32 to vector<1x128xf32>
    %56 = arith.select %54, %45, %55 : vector<1x128xi1>, vector<1x128xf32>
    %57 = arith.addf %52, %56 : vector<1x128xf32>
    %c0_19 = arith.constant 0 : index
    %c0_20 = arith.constant 0 : index
    %58 = vector.load %arg5[%c0_19, %c0_20] : memref<1x128xf32, #tpu.memory_space<vmem>>, vector<1x128xf32>
    tpu.vector_store %arg5[%c0_19, %c0_20], %57 {strides = array<i32>} : memref<1x128xf32, #tpu.memory_space<vmem>>, vector<1x128xf32>,
    %c0_i32_21 = arith.constant 0 : i32
    %59 = arith.cmpi eq, %arg1, %c0_i32_21 : i32
    %60 = arith.extui %59 : i1 to i32
    %c0_i32_22 = arith.constant 0 : i32
    %61 = arith.cmpi ne, %60, %c0_i32_22 : i32
    scf.if %61 {
      %c0_23 = arith.constant 0 : index
      %c0_24 = arith.constant 0 : index
      %62 = vector.load %arg5[%c0_23, %c0_24] : memref<1x128xf32, #tpu.memory_space<vmem>>, vector<1x128xf32>
      %63 = vector.shape_cast %62 : vector<1x128xf32> to vector<1x1x128xf32>
      %cst_25 = arith.constant dense<0.000000e+00> : vector<1xf32>
      %64 = vector.multi_reduction <add>, %63, %cst_25 [1, 2] : vector<1x1x128xf32> to vector<1xf32>
      %65 = vector.shape_cast %64 : vector<1xf32> to vector<1x1x1xf32>
      %66 = vector.extract %65[0, 0, 0] : f32 from vector<1x1x1xf32>
      %67 = vector.broadcast %66 : f32 to vector<1x128xf32>
      %c0_26 = arith.constant 0 : index
      %c0_27 = arith.constant 0 : index
      %68 = vector.load %arg4[%c0_26, %c0_27] : memref<1x128xf32, #tpu.memory_space<vmem>>, vector<1x128xf32>
      tpu.vector_store %arg4[%c0_26, %c0_27], %67 {strides = array<i32>} : memref<1x128xf32, #tpu.memory_space<vmem>>, vector<1x128xf32>,
    } else {
    }
    return
  }
  func.func @transform_0(%arg0: i32, %arg1: i32) -> (i32, i32) {
    %c1_i32 = arith.constant 1 : i32
    %0 = arith.muli %arg0, %c1_i32 : i32
    %1 = arith.addi %0, %arg1 : i32
    %c0_i32 = arith.constant 0 : i32
    %c0_i32_0 = arith.constant 0 : i32
    return %c0_i32, %1 : i32, i32
  }
  func.func @transform_1(%arg0: i32, %arg1: i32) -> (i32, i32) {
    %c1_i32 = arith.constant 1 : i32
    %0 = arith.muli %arg0, %c1_i32 : i32
    %1 = arith.addi %0, %arg1 : i32
    %c0_i32 = arith.constant 0 : i32
    %c0_i32_0 = arith.constant 0 : i32
    return %c0_i32, %1 : i32, i32
  }
  func.func @transform_2(%arg0: i32, %arg1: i32) -> (i32, i32) {
    %c0_i32 = arith.constant 0 : i32
    %c0_i32_0 = arith.constant 0 : i32
    return %arg0, %c0_i32 : i32, i32
  }
}

</mosaic_0001>

<llo_original>
// kernel: tpu_custom_call.1
$region0: #{tpu_custom_call.1}
  #allocation0 [shape = 'u32[]', space=smem, size = 0x4, offset = 0x4, fixed_abs, tag = 'smem constant byte address 0x4 - core index']
  #allocation1 [shape = 'u32[144,128]{1,0:T(1,128)}', space=vmem, size = 0x12000, scoped, tag = 'internal scratch']
  #allocation2 [shape = 'f32[1,128]{1,0:T(1,128)}', space=vmem, size = 0x200, scoped, tag = 'scratch operand']
  %s0 = inlined_call_operand.hbm [shape: f32[9,128], index: 0, kind: input, shape index: {}]
  %s1 = inlined_call_operand.vmem [shape: s32[1,128], index: 1, kind: input, shape index: {}]
  %s2 = inlined_call_operand.hbm [shape: f32[1,128], index: 2, kind: output, shape index: {}]
  %s3 = sld [smem:[#allocation0]]
  $region30: #{tpu_custom_call.1} parent=0
    _
  %s5 = ssub.s32 1, %s3
  %s6 = scalar_select 0, %s5, %s3
  $region1: #{tpu_custom_call.1} parent=0
    #allocation3 [shape = 'u8[8192]{0}', space=vmem, size = 0x2000, scoped, tag = 'input window, operand 0, single buffered']
    #allocation4 [shape = 's32[1]{0}', space=sflag, size = 0x4, scoped, tag = 'scoped memory for tpu_custom_call.1']
    #allocation5 [shape = 's32[1]{0}', space=sflag, size = 0x4, scoped, tag = 'scoped memory for tpu_custom_call.1']
    #allocation6 [shape = 'u8[512]{0}', space=vmem, size = 0x400, scoped, tag = 'output window, operand 0, single buffered']
    %7 = vsyncpa [#allocation4], 0
    %8 = vsyncpa [#allocation5], 0
    // Predicated region
    $region2: #{tpu_custom_call.1} parent=1 // pred_check
      _
    $region3: #{tpu_custom_call.1} parent=1 // pred_check_branch
      %10 = sbr.rel (0) target = $region5
    $region4: #{tpu_custom_call.1} parent=1 // pred_region
      %s11 = sadd.s32 0, 0
      %s13 = ssub.s32 256, 256
      %14 = vsyncadd [#allocation4], %s13
      %s15 = smul.addr %s11, 128
      %s16 = scalar_lea.hbm %s0, %s15
      %s17 = sshll.u32 [#allocation3], 4
      %s18 = int_to_ptr.vmem [resolvable:$true] %s17
      %23 = dma.hbm_to_vmem [thread:$0]  %s16, 256, %s18, [#allocation4], 128, 128, 8
    $region5: #{tpu_custom_call.1} parent=1 // pred_fallthru
      _
    // Predicated region
    $region6: #{tpu_custom_call.1} parent=1 // pred_check
      _
    $region7: #{tpu_custom_call.1} parent=1 // pred_check_branch
      %25 = sbr.rel (0) target = $region9
    $region8: #{tpu_custom_call.1} parent=1 // pred_region
      %s26 = sadd.s32 0, 0
      %p27 = scmp.lt.s32.totalorder %s26, 0
      %s28 = scalar_select %p27, %s26, 0
      %s29 = scalar_lea.vmem %s1, %s28
      %s30 = sadd.s32 0, 0
    $region9: #{tpu_custom_call.1} parent=1 // pred_fallthru
      _
    // Predicated region
    $region10: #{tpu_custom_call.1} parent=1 // pred_check
      _
    $region11: #{tpu_custom_call.1} parent=1 // pred_check_branch
      %32 = sbr.rel (0) target = $region13
    $region12: #{tpu_custom_call.1} parent=1 // pred_region
      %33 = dma.done [#allocation4], 256
    $region13: #{tpu_custom_call.1} parent=1 // pred_fallthru
      _
    %s34 = sadd.s32 0, 0
    %p35 = scmp.lt.s32.totalorder %s34, 0
    %s36 = scalar_select %p35, %s34, 0
    %s37 = scalar_lea.vmem %s1, %s36
    %s38 = sadd.s32 0, 0
    %s39 = sadd.s32 0, 0
    %p40 = scmp.lt.s32.totalorder %s39, 0
    %s41 = scalar_select %p40, %s39, 0
    %s42 = scalar_lea.vmem %s1, %s41
    %s43 = sadd.s32 0, 0
    %p44 = scmp.eq.s32.totalorder 0, 0
    // Predicated region
    $region14: #{tpu_custom_call.1} parent=1 // pred_check
      %p45 = pneg %p44
    $region15: #{tpu_custom_call.1} parent=1 // pred_check_branch
      %47 = sbr.rel (%p45) target = $region17
    $region16: #{tpu_custom_call.1} parent=1 // pred_region
      %48 = vst [vmem:[#allocation2] sm:$0x1] 0.0
    $region17: #{tpu_custom_call.1} parent=1 // pred_fallthru
      _
    %v49 = vld [vmem:[#allocation3] sm:$0xff]
    %v50 = vld [vmem:[#allocation3 + $0x8] sm:$0x1]
    %v51 = vld [vmem:[%s42] sm:$0x1]
    %vm52 = vcmask 1040384
    %v53 = vsel %vm52, %v50, -inf
    %v54 = vmax.f32 %v49, %v53
    %v55 = vrot.slane %v54, 4
    %v56 = vmax.f32 %v54, %v55
    %v57 = vrot.slane %v56, 2
    %v58 = vmax.f32 %v56, %v57
    %v59 = vrot.slane %v58, 1
    %v60 = vmax.f32 %v58, %v59
    %v61 = vsub.f32 %v49, %v60
    %v62 = vsub.f32 %v50, %v60
    %v63 = vmul.f32 %v61, 1.442695
    %v64 = vpow.pop %v63
    %v65 = vmul.f32 %v62, 1.442695
    %v66 = vpow.pop %v65
    %v67 = vsel %vm52, %v66, 0.0
    %v68 = vadd.f32 %v64, %v67
    %v69 = vrot.slane %v68, 4
    %v70 = vadd.f32 %v68, %v69
    %v71 = vrot.slane %v70, 2
    %v72 = vadd.f32 %v70, %v71
    %v73 = vrot.slane %v72, 1
    %v74 = vadd.f32 %v72, %v73
    %v75 = vlog2.pop %v74
    %v76 = vmul.f32 %v75, 0.6931472
    %v77 = vadd.f32 %v60, %v76
    %v78 = vrcp.pop %v74
    %v79 = vmul.f32 1.0, %v78
    %v80 = vmul.f32 %v64, %v79
    %v81 = vmul.f32 %v66, %v79
    %v82 = vmax.f32 %v80, 1e-07
    %v83 = vmax.f32 %v81, 1e-07
    %v84 = vsel %vm52, %v83, 0.0
    %v85 = vadd.f32 %v82, %v84
    %v86 = vrot.slane %v85, 4
    %v87 = vadd.f32 %v85, %v86
    %v88 = vrot.slane %v87, 2
    %v89 = vadd.f32 %v87, %v88
    %v90 = vrot.slane %v89, 1
    %v91 = vadd.f32 %v89, %v90
    %v92 = vlaneseq
    %v93 = vshrl.u32 %v92, 7
    %v94 = vadd.s32 %v93, 8
    %v95 = vlaneseq
    %v96 = vshrl.u32 %v95, 7
    %v97 = vsub.s32 0, %v96
    %v98 = vrot.slane %v51, %v97
    %vm99 = vcmp.eq.s32.totalorder %v93, %v98
    %vm100 = vcmp.eq.s32.totalorder %v94, %v98
    %v101 = vsub.s32 %v51, 1
    %v102 = vlaneseq
    %v103 = vshrl.u32 %v102, 7
    %v104 = vsub.s32 0, %v103
    %v105 = vrot.slane %v101, %v104
    %vm106 = vcmp.eq.s32.totalorder %v93, %v105
    %vm107 = vcmp.eq.s32.totalorder %v94, %v105
    %v108 = vsel %vm99, %v49, 0.0
    %v109 = vsel %vm100, %v50, 0.0
    %v110 = vsel %vm52, %v109, 0.0
    %v111 = vadd.f32 %v108, %v110
    %v112 = vrot.slane %v111, 4
    %v113 = vadd.f32 %v111, %v112
    %v114 = vrot.slane %v113, 2
    %v115 = vadd.f32 %v113, %v114
    %v116 = vrot.slane %v115, 1
    %v117 = vadd.f32 %v115, %v116
    %v118 = vsel %vm106, %v82, 0.0
    %v119 = vsel %vm107, %v83, 0.0
    %v120 = vsel %vm52, %v119, 0.0
    %v121 = vadd.f32 %v118, %v120
    %v122 = vrot.slane %v121, 4
    %v123 = vadd.f32 %v121, %v122
    %v124 = vrot.slane %v123, 2
    %v125 = vadd.f32 %v123, %v124
    %v126 = vrot.slane %v125, 1
    %v127 = vadd.f32 %v125, %v126
    %v128 = vsub.f32 %v77, %v117
    %v129 = vsub.f32 %v91, %v127
    %v130 = vmul.f32 %v129, 9.2103405
    %v131 = vadd.f32 %v128, %v130
    %s132 = sadd.s32 0, 0
    %s133 = smul.u32 %s132, 128
    %v134 = vlaneseq
    %v135 = vand.u32 %v134, 127
    %v136 = vstv %s133
    %v137 = vadd.s32 %v136, %v135
    %v138 = vld [vmem:[#allocation2] sm:$0x1]
    %vm139 = vcmp.lt.s32.totalorder %v137, 8
    %v140 = vsel %vm139, %v131, 0.0
    %v141 = vadd.f32 %v138, %v140
    %142 = vst [vmem:[#allocation2] sm:$0x1] %v141
    // Predicated region
    $region18: #{tpu_custom_call.1} parent=1 // pred_check
      %p143 = pneg %p44
    $region19: #{tpu_custom_call.1} parent=1 // pred_check_branch
      %145 = sbr.rel (%p143) target = $region21
    $region20: #{tpu_custom_call.1} parent=1 // pred_region
      %v146 = vld [vmem:[#allocation2] sm:$0x1]
      %v147 = vsel %vm52, %v146, 0.0
      %148 = vadd.xlane.f32.xlu0 %v147
      %v149 = vpop.xlane.xlu0 %148
      %v150 = vrot.slane %v149, 4
      %v151 = vadd.f32 %v149, %v150
      %v152 = vrot.slane %v151, 2
      %v153 = vadd.f32 %v151, %v152
      %v154 = vrot.slane %v153, 1
      %v155 = vadd.f32 %v153, %v154
      %s156 = vtos %v155
      %v157 = vstv %s156
      %158 = vst [vmem:[#allocation6] sm:$0x1] %v157
    $region21: #{tpu_custom_call.1} parent=1 // pred_fallthru
      _
    // Predicated region
    $region22: #{tpu_custom_call.1} parent=1 // pred_check
      _
    $region23: #{tpu_custom_call.1} parent=1 // pred_check_branch
      %160 = sbr.rel (0) target = $region25
    $region24: #{tpu_custom_call.1} parent=1 // pred_region
      %s162 = ssub.s32 16, 16
      %163 = vsyncadd [#allocation5], %s162
      %s165 = sshll.u32 [#allocation6], 4
      %s166 = int_to_ptr.vmem [resolvable:$true] %s165
      %168 = dma.vmem_to_hbm [thread:$0]  %s166, 16, %s2, [#allocation5]
    $region25: #{tpu_custom_call.1} parent=1 // pred_fallthru
      _
    // Predicated region
    $region26: #{tpu_custom_call.1} parent=1 // pred_check
      _
    $region27: #{tpu_custom_call.1} parent=1 // pred_check_branch
      %170 = sbr.rel (0) target = $region29
    $region28: #{tpu_custom_call.1} parent=1 // pred_region
      %171 = dma.done [#allocation5], 16
    $region29: #{tpu_custom_call.1} parent=1 // pred_fallthru
      _
    %172 = vsyncpa [#allocation4], 1
    %173 = vsyncpa [#allocation5], 1

</llo_original>
